<compile_context>
chip_gen: v5e
topology: v5e:2x2
jax: 0.10.0
libtpu: 0.0.40
codegen_flags: <defaults>
</compile_context>

<pallas_src>
import numpy as np
import jax
import jax.numpy as jnp
from jax.experimental import pallas as pl
from jax.experimental.pallas import tpu as pltpu


# ----------------------------------------------------------------------------
# Synthetic group data for C8, L = L_out = 2 (what escnn would provide)
# ----------------------------------------------------------------------------
N_GRID = 8                                  # regular grid = all 8 elements of C8
IN_IRREPS = [                               # (freq, size, sum_of_squares_constituents)
    (0, 1, 1),
    (1, 2, 2),
    (2, 2, 2),
]
OUT_IRREPS = IN_IRREPS                      # L_out == L
IN_SIZE = sum(s * s // c for _, s, c in IN_IRREPS)      # 5
OUT_SIZE = sum(s * s // c for _, s, c in OUT_IRREPS)    # 5

# psi_inds: slice of fts_out owned by each out-irrep
PSI_INDS = {}
_off = 0
for _f, _s, _c in OUT_IRREPS:
    _d = _s * _s // _c
    PSI_INDS[_f] = list(range(_off, _off + _d))
    _off += _d


def endomorphism_basis(freq, size):
    if size == 1:
        return np.ones((1, 1, 1), dtype=np.float32)
    # complex-type 2-D irrep of a cyclic group: End = span{I, J}
    return np.stack(
        [np.eye(2, dtype=np.float32),
         np.array([[0.0, -1.0], [1.0, 0.0]], dtype=np.float32)]
    ).astype(np.float32)


def build_fourier_matrices():
    """Band-limited sampling matrix A (grid x coeffs) on the regular C8 grid and
    its exact inverse Ainv = A^T / N (orthogonal DFT pair)."""
    # TODO(synk): escnn's FourierPointwise builds A from sqrt(psi.size)-scaled irrep
    # columns + a pseudo-inverse; here an exactly orthogonal DFT pair is used
    # (identical semantics, possibly different constant scaling).
    thetas = 2.0 * np.pi * np.arange(N_GRID) / N_GRID
    cols = []
    for f, s, c in IN_IRREPS:
        if s == 1:
            cols.append(np.ones_like(thetas))
        else:
            cols.append(np.sqrt(2.0) * np.cos(f * thetas))
            cols.append(np.sqrt(2.0) * np.sin(f * thetas))
    A = np.stack(cols, axis=1).astype(np.float32)           # (N, in_size)
    Ainv = (A.T / N_GRID).astype(np.float32)                # (out_size, N)
    return A, Ainv


# Tensor product: freq1 (x) freq1 = freq2 (+) freq0 (+) freq0 — all within bl_irreps(L_out)
J_BASIS_SIZE = 2
J_CG_SIZE = 2
P_TOTAL = J_BASIS_SIZE * J_CG_SIZE                          # 4 rows of p_jj
PSIS = [(2, 2, 2), (0, 1, 1), (0, 1, 1)]
K_TOTAL = sum(s for _, s, _ in PSIS)                        # 4


def build_change_of_basis():
    # columns: freq-2 pair (v1, v2), trivial u1, trivial u2; rows: e11, e12, e21, e22
    r = 1.0 / np.sqrt(2.0)
    Q = np.array([[r, 0.0, r, 0.0],
                  [0.0, r, 0.0, r],
                  [0.0, r, 0.0, -r],
                  [-r, 0.0, r, 0.0]], dtype=np.float32)     # (size_jb*size_jcg, K)
    return Q


def build_blockdiag_scatter():
    """T[s, i, j] = coefficient of fts_out[s] in psi_ft_block[i, j].

    Encodes the per-psi endomorphism expansion
    (einsum('knm,ml->nkl', endomorphism, fts).view(size, size)) together with the
    torch.block_diag placement."""
    T = np.zeros((OUT_SIZE, K_TOTAL, K_TOTAL), dtype=np.float32)
    row = 0
    for freq, size, ssc in PSIS:
        inds = PSI_INDS[freq]
        m = size // ssc
        E = endomorphism_basis(freq, size)                  # (k, size, size)
        for n in range(size):
            for k in range(E.shape[0]):
                for l in range(m):
                    for mm in range(size):
                        T[inds[mm * m + l], row + n, row + k * m + l] += E[k, n, mm]
        row += size
    return T


def build_fused_output_matrix(Ainv, T, Q):
    """M[n, k*P + (a*size_jcg + b)] = sum_s Ainv[s, n] * (Q @ T[s])[a*size_jcg+b, k].

    Folds inverse FT + endomorphism/block_diag expansion + change-of-basis matmul
    + final .permute(2, 0, 1) into a single grid->output matrix, so the kernel's
    last step is one (1,N)x(N,K*P) contraction and the wrapper reshape is free."""
    QT = np.einsum('pj,sjk->spk', Q, T)                     # (out_size, P, K)
    M3 = np.einsum('sn,spk->npk', Ainv, QT)                 # (N, P, K)
    M = M3.transpose(0, 2, 1).reshape(N_GRID, K_TOTAL * P_TOTAL)   # cols ordered (k, p)
    return np.ascontiguousarray(M).astype(np.float32)


# ----------------------------------------------------------------------------
# Pallas kernel: Fourier softmax activation + fused output projection
# ----------------------------------------------------------------------------
def irreps_map_kernel(fts_ref, A_ref, M_ref, out_ref):
    # 1) sample the band-limited log-distribution on the group grid:
    #    f[n] = sum_i A[n, i] * fts[i]   (broadcast-multiply + lane reduce; no MXU)
    f = jnp.sum(A_ref[...] * fts_ref[...], axis=-1, keepdims=True)            # (N, 1)
    # 2) FourierPointwise 'softmax' over the grid axis (exp on EUP, approx rcp on EUP)
    m = jnp.max(f, axis=0, keepdims=True)                                      # (1, 1)
    e = jnp.exp(f - m)                                                         # (N, 1)
    inv_z = pl.reciprocal(jnp.sum(e, axis=0, keepdims=True), approx=True)      # (1, 1)
    # 3) fused inverse-FT + endomorphism/block_diag + change-of-basis + permute:
    #    c_flat[col] = (1/Z) * sum_n e[n] * M[n, col]   (sublane reduce)
    out_ref[...] = jnp.sum(e * M_ref[...], axis=0, keepdims=True) * inv_z      # (1, K*P)


def irreps_map_forward(fts_in, A_nd, M_flat):
    fts2d = fts_in.reshape(1, -1).astype(jnp.float32)        # (1, in_size)
    c_flat = pl.pallas_call(
        irreps_map_kernel,
        out_shape=jax.ShapeDtypeStruct((1, K_TOTAL * P_TOTAL), jnp.float32),
        in_specs=[pl.BlockSpec(memory_space=pltpu.MemorySpace.VMEM)] * 3,
        out_specs=pl.BlockSpec(memory_space=pltpu.MemorySpace.VMEM),
    )(fts2d, A_nd, M_flat)
    # c_jj = p_jj.view(size_j_basis, size_j_cg, K).permute(2, 0, 1) — the permute
    # is already folded into M's column ordering; only a free reshape remains.
    return c_flat.reshape(K_TOTAL, J_BASIS_SIZE, J_CG_SIZE)


def reference_forward(fts_in, A, Ainv, T, Q):
    # Unfused reference (mirrors the torch module step by step); also validates
    # the host-side fusion of Ainv/T/Q/permute into M.
    f = jnp.asarray(A) @ fts_in
    p = jax.nn.softmax(f)
    fts_out = jnp.asarray(Ainv) @ p
    blk = jnp.einsum('s,sij->ij', fts_out, jnp.asarray(T))
    pjj = jnp.asarray(Q) @ blk
    return pjj.reshape(J_BASIS_SIZE, J_CG_SIZE, K_TOTAL).transpose(2, 0, 1)


if __name__ == "__main__":
    A_np, Ainv_np = build_fourier_matrices()
    Q_np = build_change_of_basis()
    T_np = build_blockdiag_scatter()
    M_np = build_fused_output_matrix(Ainv_np, T_np, Q_np)    # (N, K*P) fused matrix

    # fts_in parameter: module __init__ = ones for the trivial irrep coefficient,
    # zeros elsewhere; add a small deterministic perturbation so the softmax /
    # Fourier path is non-degenerate.
    base = np.concatenate([np.ones(1), np.zeros(2), np.zeros(2)]).astype(np.float32)
    key = jax.random.PRNGKey(0)
    fts_in = jnp.asarray(base) + 0.25 * jax.random.normal(key, (IN_SIZE,), dtype=jnp.float32)

    A_nd = jnp.asarray(A_np)         # (N, in_size), grid-major — no runtime .T
    M_flat = jnp.asarray(M_np)       # (N, K*P)

    c_jj = irreps_map_forward(fts_in, A_nd, M_flat)
    c_jj = jax.block_until_ready(c_jj)

    c_ref = reference_forward(fts_in, A_np, Ainv_np, T_np, Q_np)
    assert c_jj.shape == (K_TOTAL, J_BASIS_SIZE, J_CG_SIZE)
    # Tightened vs v1; sole approximation in the kernel is the EUP approx reciprocal.
    np.testing.assert_allclose(np.asarray(c_jj), np.asarray(c_ref), rtol=5e-3, atol=2e-4)
    print("KERNEL_OK")
</pallas_src>

<mosaic_0001>
module attributes {stable_mosaic.version = 11 : i64} {
  func.func @irreps_map_kernel(%arg0: memref<1x5xf32, #tpu.memory_space<vmem>>, %arg1: memref<8x5xf32, #tpu.memory_space<vmem>>, %arg2: memref<8x16xf32, #tpu.memory_space<vmem>>, %arg3: memref<1x16xf32, #tpu.memory_space<vmem>>) attributes {dimension_semantics = [], scalar_prefetch = 0 : i64, scratch_operands = 0 : i64, tpu.core_type = #tpu.core_type<tc>} {
    %c0 = arith.constant 0 : index
    %c0_0 = arith.constant 0 : index
    %0 = vector.load %arg1[%c0, %c0_0] : memref<8x5xf32, #tpu.memory_space<vmem>>, vector<8x5xf32>
    %c0_1 = arith.constant 0 : index
    %c0_2 = arith.constant 0 : index
    %1 = vector.load %arg0[%c0_1, %c0_2] : memref<1x5xf32, #tpu.memory_space<vmem>>, vector<1x5xf32>
    %2 = vector.broadcast %1 : vector<1x5xf32> to vector<8x5xf32>
    %3 = arith.mulf %0, %2 : vector<8x5xf32>
    %cst = arith.constant dense<0.000000e+00> : vector<8xf32>
    %4 = vector.multi_reduction <add>, %3, %cst [1] : vector<8x5xf32> to vector<8xf32>
    %5 = vector.shape_cast %4 : vector<8xf32> to vector<8x1xf32>
    %cst_3 = arith.constant dense<0xFF800000> : vector<1xf32>
    %6 = vector.multi_reduction <maximumf>, %5, %cst_3 [0] : vector<8x1xf32> to vector<1xf32>
    %7 = vector.shape_cast %6 : vector<1xf32> to vector<1x1xf32>
    %8 = vector.broadcast %7 : vector<1x1xf32> to vector<8x1xf32>
    %9 = arith.subf %5, %8 : vector<8x1xf32>
    %10 = math.exp %9 : vector<8x1xf32>
    %cst_4 = arith.constant dense<0.000000e+00> : vector<1xf32>
    %11 = vector.multi_reduction <add>, %10, %cst_4 [0] : vector<8x1xf32> to vector<1xf32>
    %12 = vector.shape_cast %11 : vector<1xf32> to vector<1x1xf32>
    %13 = tpu.reciprocal %12 {approx = true} : vector<1x1xf32> -> vector<1x1xf32>
    %c0_5 = arith.constant 0 : index
    %c0_6 = arith.constant 0 : index
    %14 = vector.load %arg2[%c0_5, %c0_6] : memref<8x16xf32, #tpu.memory_space<vmem>>, vector<8x16xf32>
    %15 = vector.broadcast %10 : vector<8x1xf32> to vector<8x16xf32>
    %16 = arith.mulf %15, %14 : vector<8x16xf32>
    %cst_7 = arith.constant dense<0.000000e+00> : vector<16xf32>
    %17 = vector.multi_reduction <add>, %16, %cst_7 [0] : vector<8x16xf32> to vector<16xf32>
    %18 = vector.shape_cast %17 : vector<16xf32> to vector<1x16xf32>
    %19 = vector.broadcast %13 : vector<1x1xf32> to vector<1x16xf32>
    %20 = arith.mulf %18, %19 : vector<1x16xf32>
    %c0_8 = arith.constant 0 : index
    %c0_9 = arith.constant 0 : index
    %21 = vector.load %arg3[%c0_8, %c0_9] : memref<1x16xf32, #tpu.memory_space<vmem>>, vector<1x16xf32>
    tpu.vector_store %arg3[%c0_8, %c0_9], %20 {strides = array<i32>} : memref<1x16xf32, #tpu.memory_space<vmem>>, vector<1x16xf32>,
    return
  }
}

</mosaic_0001>

<llo_original>
// kernel: tpu_custom_call.1
$region0: #{tpu_custom_call.1}
  #allocation0 [shape = 'u32[]', space=smem, size = 0x4, offset = 0x4, fixed_abs, tag = 'smem constant byte address 0x4 - core index']
  #allocation1 [shape = 'u32[72,128]{1,0:T(1,128)}', space=vmem, size = 0x9000, scoped, tag = 'internal scratch']
  %s0 = inlined_call_operand.hbm [shape: f32[1,5], index: 0, kind: input, shape index: {}]
  %s1 = inlined_call_operand.hbm [shape: f32[8,5], index: 1, kind: input, shape index: {}]
  %s2 = inlined_call_operand.hbm [shape: f32[8,16], index: 2, kind: input, shape index: {}]
  %s3 = inlined_call_operand.hbm [shape: f32[1,16], index: 3, kind: output, shape index: {}]
  %s4 = sld [smem:[#allocation0]]
  $region34: #{tpu_custom_call.1} parent=0
    _
  %s6 = ssub.s32 1, %s4
  %s7 = scalar_select 0, %s6, %s4
  $region1: #{tpu_custom_call.1} parent=0
    #allocation2 [shape = 'u8[512]{0}', space=vmem, size = 0x400, scoped, tag = 'input window, operand 0, single buffered']
    #allocation3 [shape = 's32[1]{0}', space=sflag, size = 0x4, scoped, tag = 'scoped memory for tpu_custom_call.1']
    #allocation4 [shape = 's32[1]{0}', space=sflag, size = 0x4, scoped, tag = 'scoped memory for tpu_custom_call.1']
    #allocation5 [shape = 'u8[4096]{0}', space=vmem, size = 0x1000, scoped, tag = 'input window, operand 1, single buffered']
    #allocation6 [shape = 's32[1]{0}', space=sflag, size = 0x4, scoped, tag = 'scoped memory for tpu_custom_call.1']
    #allocation7 [shape = 'u8[4096]{0}', space=vmem, size = 0x1000, scoped, tag = 'input window, operand 2, single buffered']
    #allocation8 [shape = 'u8[512]{0}', space=vmem, size = 0x400, scoped, tag = 'output window, operand 0, single buffered']
    %8 = vsyncpa [#allocation3], 0
    %9 = vsyncpa [#allocation6], 0
    %10 = vsyncpa [#allocation4], 0
    // Predicated region
    $region2: #{tpu_custom_call.1} parent=1 // pred_check
      _
    $region3: #{tpu_custom_call.1} parent=1 // pred_check_branch
      %12 = sbr.rel (0) target = $region5
    $region4: #{tpu_custom_call.1} parent=1 // pred_region
      %14 = vsyncadd [#allocation3], 0
      %s16 = sshll.u32 %s0, 4
      %s17 = int_to_ptr.hbm [resolvable:$true] %s16
      %s18 = sshll.u32 [#allocation2], 4
      %s19 = int_to_ptr.vmem [resolvable:$true] %s18
      %21 = dma.hbm_to_vmem [thread:$0]  %s17, 16, %s19, [#allocation3]
    $region5: #{tpu_custom_call.1} parent=1 // pred_fallthru
      _
    // Predicated region
    $region6: #{tpu_custom_call.1} parent=1 // pred_check
      _
    $region7: #{tpu_custom_call.1} parent=1 // pred_check_branch
      %23 = sbr.rel (0) target = $region9
    $region8: #{tpu_custom_call.1} parent=1 // pred_region
      %25 = vsyncadd [#allocation6], 0
      %s27 = sshll.u32 %s1, 4
      %s28 = int_to_ptr.hbm [resolvable:$true] %s27
      %s29 = sshll.u32 [#allocation5], 4
      %s30 = int_to_ptr.vmem [resolvable:$true] %s29
      %32 = dma.hbm_to_vmem [thread:$0]  %s28, 128, %s30, [#allocation6]
    $region9: #{tpu_custom_call.1} parent=1 // pred_fallthru
      _
    // Predicated region
    $region10: #{tpu_custom_call.1} parent=1 // pred_check
      _
    $region11: #{tpu_custom_call.1} parent=1 // pred_check_branch
      %34 = sbr.rel (0) target = $region13
    $region12: #{tpu_custom_call.1} parent=1 // pred_region
      %36 = vsyncadd [#allocation6], 0
      %s38 = sshll.u32 %s2, 4
      %s39 = int_to_ptr.hbm [resolvable:$true] %s38
      %s40 = sshll.u32 [#allocation7], 4
      %s41 = int_to_ptr.vmem [resolvable:$true] %s40
      %43 = dma.hbm_to_vmem [thread:$0]  %s39, 128, %s41, [#allocation6]
    $region13: #{tpu_custom_call.1} parent=1 // pred_fallthru
      _
    // Predicated region
    $region14: #{tpu_custom_call.1} parent=1 // pred_check
      _
    $region15: #{tpu_custom_call.1} parent=1 // pred_check_branch
      %45 = sbr.rel (0) target = $region17
    $region16: #{tpu_custom_call.1} parent=1 // pred_region
      %47 = dma.done [#allocation3], 16
    $region17: #{tpu_custom_call.1} parent=1 // pred_fallthru
      _
    // Predicated region
    $region18: #{tpu_custom_call.1} parent=1 // pred_check
      _
    $region19: #{tpu_custom_call.1} parent=1 // pred_check_branch
      %49 = sbr.rel (0) target = $region21
    $region20: #{tpu_custom_call.1} parent=1 // pred_region
      %51 = dma.done [#allocation6], 128
    $region21: #{tpu_custom_call.1} parent=1 // pred_fallthru
      _
    // Predicated region
    $region22: #{tpu_custom_call.1} parent=1 // pred_check
      _
    $region23: #{tpu_custom_call.1} parent=1 // pred_check_branch
      %53 = sbr.rel (0) target = $region25
    $region24: #{tpu_custom_call.1} parent=1 // pred_region
      %55 = dma.done [#allocation6], 128
    $region25: #{tpu_custom_call.1} parent=1 // pred_fallthru
      _
    %v56 = vld [vmem:[#allocation5] sm:$0xff]
    %v57 = vld [vmem:[#allocation2] sm:$0x1]
    %v59 = vperm.slane %v57, 0
    %v61 = vmul.f32 %v56, %v59
    %vm62 = vcmask 39936
    %v63 = vsel %vm62, %v61, 0.0
    %64 = vadd.xlane.f32.xlu0 %v63
    %v65 = vpop.xlane.xlu0 %64
    %v66 = vrot.slane %v65, 4
    %v67 = vmax.f32 %v65, %v66
    %v68 = vrot.slane %v67, 2
    %v69 = vmax.f32 %v67, %v68
    %v70 = vrot.slane %v69, 1
    %v71 = vmax.f32 %v69, %v70
    %v72 = vsub.f32 %v65, %v71
    %v73 = vmul.f32 %v72, 1.442695
    %v74 = vpow.pop %v73
    %v75 = vrot.slane %v74, 4
    %v76 = vadd.f32 %v74, %v75
    %v77 = vrot.slane %v76, 2
    %v78 = vadd.f32 %v76, %v77
    %v79 = vrot.slane %v78, 1
    %v80 = vadd.f32 %v78, %v79
    %v81 = vrcp.pop %v80
    %v82 = vld [vmem:[#allocation7] sm:$0xff]
    %v83 = vmul.f32 %v74, %v82
    %vm84 = vcmask 130048
    %v85 = vsel %vm84, %v83, 0.0
    %v86 = vrot.slane %v85, 4
    %v87 = vadd.f32 %v85, %v86
    %v88 = vrot.slane %v87, 2
    %v89 = vadd.f32 %v87, %v88
    %v90 = vrot.slane %v89, 1
    %v91 = vadd.f32 %v89, %v90
    %v92 = vmul.f32 %v91, %v81
    %vm93 = vcmask 122880
    %94 = vst.msk [vmem:[#allocation8] sm:$0x1] %vm93, %v92
    // Predicated region
    $region26: #{tpu_custom_call.1} parent=1 // pred_check
      _
    $region27: #{tpu_custom_call.1} parent=1 // pred_check_branch
      %96 = sbr.rel (0) target = $region29
    $region28: #{tpu_custom_call.1} parent=1 // pred_region
      %98 = vsyncadd [#allocation4], 0
      %s100 = sshll.u32 [#allocation8], 4
      %s101 = int_to_ptr.vmem [resolvable:$true] %s100
      %s102 = sshll.u32 %s3, 4
      %s103 = int_to_ptr.hbm [resolvable:$true] %s102
      %105 = dma.vmem_to_hbm [thread:$0]  %s101, 16, %s103, [#allocation4]
    $region29: #{tpu_custom_call.1} parent=1 // pred_fallthru
      _
    // Predicated region
    $region30: #{tpu_custom_call.1} parent=1 // pred_check
      _
    $region31: #{tpu_custom_call.1} parent=1 // pred_check_branch
      %107 = sbr.rel (0) target = $region33
    $region32: #{tpu_custom_call.1} parent=1 // pred_region
      %109 = dma.done [#allocation4], 16
    $region33: #{tpu_custom_call.1} parent=1 // pred_fallthru
      _
    %110 = vsyncpa [#allocation3], 1
    %111 = vsyncpa [#allocation6], 1
    %112 = vsyncpa [#allocation4], 1

</llo_original>
